<compile_context>
chip_gen: v7x
topology: tpu7x:2x2x1
jax: 0.10.0
libtpu: 0.0.40
codegen_flags: <defaults>
</compile_context>

<pallas_src>
import jax
import jax.numpy as jnp
from jax.experimental import pallas as pl
from jax.experimental.pallas import tpu as pltpu

_LANES = 128
_SUBLANES = 8
_ACC_ROWS = 64                    # (64,128) f32 accumulator -> 8 independent vreg chains
_TARGET_BLOCK_BYTES = 4 << 20     # ~4 MiB per operand per grid step
_VMEM_LIMIT_BYTES = 64 << 20      # raise scoped VMEM (v5e default is only 16 MiB)


def _is_dual_tensorcore():
    """Best-effort detection of megacore (2 TensorCores per device) chips."""
    try:
        kind = jax.devices()[0].device_kind.lower()
    except Exception:  # pragma: no cover
        return False
    return any(tag in kind for tag in ("v4", "v5p", "v7"))


# ---------------- Pallas kernels ----------------

def _make_none_kernel(has_weight, loss_weight):
    """Elementwise loss_weight * weight * (p - t)^2 (reduction='none')."""
    def kernel(*refs):
        if has_weight:
            p_ref, t_ref, w_ref, o_ref = refs
        else:
            p_ref, t_ref, o_ref = refs
        d = p_ref[...].astype(jnp.float32) - t_ref[...].astype(jnp.float32)
        val = d * d
        if has_weight:
            val = val * w_ref[...].astype(jnp.float32)
        if loss_weight != 1.0:
            val = val * jnp.float32(loss_weight)
        o_ref[...] = val.astype(o_ref.dtype)
    return kernel


def _make_reduce_kernel(has_weight, block_rows, acc_rows, bpc, rows, need_mask):
    """Per-lane partial sums of weight*(p-t)^2 (and weight) per grid split."""
    n_grp = block_rows // acc_rows

    def kernel(*refs):
        if has_weight:
            p_ref, t_ref, w_ref, lpart_ref, wpart_ref, lacc, wacc = refs
        else:
            p_ref, t_ref, lpart_ref, lacc = refs
            wpart_ref = wacc = None

        c = pl.program_id(0)   # split (TensorCore) index
        i = pl.program_id(1)   # block index within split

        @pl.when(i == 0)
        def _():
            lacc[...] = jnp.zeros_like(lacc)
            if has_weight:
                wacc[...] = jnp.zeros_like(wacc)

        d = p_ref[...].astype(jnp.float32) - t_ref[...].astype(jnp.float32)
        val = d * d
        if has_weight:
            w = w_ref[...].astype(jnp.float32)
            val = val * w
        else:
            w = None

        def accumulate(v, wv):
            # (block_rows,128)->(n_grp,acc_rows,128): relayout-free grouping of full
            # sublane tiles; axis-0 reduce is cross-vreg VPU adds over acc_rows//8
            # independent accumulator vregs (no serial single-chain dependency).
            lacc[...] += v.reshape(n_grp, acc_rows, _LANES).sum(axis=0)
            if has_weight:
                wacc[...] += wv.reshape(n_grp, acc_rows, _LANES).sum(axis=0)

        if need_mask:
            b = c * bpc + i                       # unclamped logical block id
            tail = (b + 1) * block_rows > rows    # only tail/duplicate blocks mask

            @pl.when(tail)
            def _():
                row_ids = (jax.lax.broadcasted_iota(jnp.int32, (block_rows, _LANES), 0)
                           + b * block_rows)
                valid = row_ids < rows
                vm = jnp.where(valid, val, 0.0)
                wm = jnp.where(valid, w, 0.0) if has_weight else None
                accumulate(vm, wm)

            @pl.when(jnp.logical_not(tail))
            def _():
                accumulate(val, w)
        else:
            accumulate(val, w)

        @pl.when(i == pl.num_programs(1) - 1)
        def _():
            lpart_ref[...] = lacc[...].reshape(1, acc_rows, _LANES)
            if has_weight:
                wpart_ref[...] = wacc[...].reshape(1, acc_rows, _LANES)
    return kernel


# ---------------- wrapper (glue) ----------------

def mse_loss_pallas(pred, target, weight=None, loss_weight=1.0, reduction='mean',
                    max_block_bytes=_TARGET_BLOCK_BYTES, num_splits=None):
    if reduction not in ('none', 'mean', 'sum'):
        raise ValueError(f'Unsupported reduction mode: {reduction}.')
    pred = jnp.asarray(pred)
    target = jnp.asarray(target)
    assert pred.shape == target.shape
    # Keep a single compute/output dtype (accumulation is always f32 in-kernel).
    target = target.astype(pred.dtype)

    orig_shape = pred.shape
    numel = int(pred.size)
    loss_weight = float(loss_weight)
    has_weight = weight is not None
    itemsize = jnp.dtype(pred.dtype).itemsize

    if has_weight:
        weight = jnp.asarray(weight)
        if weight.shape != orig_shape:
            # TODO(synk): broadcastable (per-channel / per-sample) weights are
            # materialized to full size here; an in-kernel broadcast would save one
            # full HBM read+write. Full-shape weights (common case) take no copy.
            weight = jnp.broadcast_to(weight, orig_shape)
        weight = weight.astype(pred.dtype)

    # Lane-dense (rows, 128) slab. Pad (copy) only when numel is not a multiple of
    # 128 or the slab is tinier than one (8,128) tile; common shapes reshape free.
    rows = max(_SUBLANES, -(-numel // _LANES))
    padded = rows * _LANES - numel

    def to_slab(x):
        flat = x.reshape(-1)
        if padded:
            flat = jnp.concatenate([flat, jnp.zeros((padded,), flat.dtype)])
        return flat.reshape(rows, _LANES)

    inputs = [to_slab(pred), to_slab(target)]
    if has_weight:
        inputs.append(to_slab(weight))
    n_in = len(inputs)

    # Byte-based block sizing (~max_block_bytes per operand), multiple of 64 rows.
    target_rows = max(_ACC_ROWS,
                      (max_block_bytes // (_LANES * itemsize)) // _ACC_ROWS * _ACC_ROWS)
    if rows >= target_rows:
        block_rows = target_rows
    else:
        block_rows = max(_SUBLANES, (rows // _SUBLANES) * _SUBLANES)
    n_blocks = pl.cdiv(rows, block_rows)
    acc_rows = _ACC_ROWS if block_rows % _ACC_ROWS == 0 else _SUBLANES

    # ---- reduction='none' : pure elementwise streaming ----
    if reduction == 'none':
        spec = pl.BlockSpec((block_rows, _LANES), lambda i: (i, 0))
        cost = pl.CostEstimate(flops=3 * numel, transcendentals=0,
                               bytes_accessed=(n_in + 1) * numel * itemsize)
        out2 = pl.pallas_call(
            _make_none_kernel(has_weight, loss_weight),
            out_shape=jax.ShapeDtypeStruct((rows, _LANES), pred.dtype),
            grid_spec=pltpu.PrefetchScalarGridSpec(
                num_scalar_prefetch=0,
                grid=(n_blocks,),
                in_specs=[spec] * n_in,
                out_specs=spec),
            compiler_params=pltpu.CompilerParams(
                dimension_semantics=("parallel",),
                vmem_limit_bytes=_VMEM_LIMIT_BYTES),
            cost_estimate=cost,
        )(*inputs)
        if padded:
            return out2.reshape(-1)[:numel].reshape(orig_shape)
        return out2.reshape(orig_shape)

    # ---- 'mean' / 'sum' : two-level reduction ----
    if num_splits is None:
        num_splits = 2 if (_is_dual_tensorcore() and n_blocks >= 2) else 1
    n_splits = max(1, min(int(num_splits), n_blocks))
    bpc = pl.cdiv(n_blocks, n_splits)           # blocks per split
    covered_rows = n_splits * bpc * block_rows
    need_mask = covered_rows != rows
    clamp = n_splits * bpc > n_blocks            # uneven split -> duplicate block

    def block_index(c, i):
        b = c * bpc + i
        if clamp:
            b = jnp.minimum(b, n_blocks - 1)     # keep DMA in-bounds; kernel masks dup
        return b

    in_spec = pl.BlockSpec((block_rows, _LANES), lambda c, i: (block_index(c, i), 0))
    part_spec = pl.BlockSpec((1, acc_rows, _LANES), lambda c, i: (c, 0, 0))
    part_shape = jax.ShapeDtypeStruct((n_splits, acc_rows, _LANES), jnp.float32)

    if has_weight:
        out_shape = (part_shape, part_shape)
        out_specs = (part_spec, part_spec)
        scratch = [pltpu.VMEM((acc_rows, _LANES), jnp.float32),
                   pltpu.VMEM((acc_rows, _LANES), jnp.float32)]
    else:
        out_shape = part_shape
        out_specs = part_spec
        scratch = [pltpu.VMEM((acc_rows, _LANES), jnp.float32)]

    cost = pl.CostEstimate(flops=(4 if has_weight else 3) * numel, transcendentals=0,
                           bytes_accessed=n_in * numel * itemsize)

    parts = pl.pallas_call(
        _make_reduce_kernel(has_weight, block_rows, acc_rows, bpc, rows, need_mask),
        out_shape=out_shape,
        grid_spec=pltpu.PrefetchScalarGridSpec(
            num_scalar_prefetch=0,
            grid=(n_splits, bpc),
            in_specs=[in_spec] * n_in,
            out_specs=out_specs,
            scratch_shapes=scratch),
        compiler_params=pltpu.CompilerParams(
            dimension_semantics=("parallel", "arbitrary"),
            vmem_limit_bytes=_VMEM_LIMIT_BYTES),
        cost_estimate=cost,
    )(*inputs)

    if has_weight:
        lparts, wparts = parts
        loss_sum = jnp.sum(lparts)
        if reduction == 'sum':
            result = loss_weight * loss_sum
        else:  # weighted 'mean' (denominator = broadcast-weight sum, as in basicsr)
            result = loss_weight * loss_sum / jnp.sum(wparts)
    else:
        loss_sum = jnp.sum(parts)
        if reduction == 'sum':
            result = loss_weight * loss_sum
        else:  # 'mean'
            result = loss_sum * (loss_weight / numel)

    return result.astype(pred.dtype)


class MSELoss:
    """Pallas-backed MSE (L2) loss mirroring basicsr MSELoss."""

    def __init__(self, loss_weight=1.0, reduction='mean'):
        if reduction not in ('none', 'mean', 'sum'):
            raise ValueError(f'Unsupported reduction mode: {reduction}.')
        self.loss_weight = loss_weight
        self.reduction = reduction

    def __call__(self, pred, target, weight=None, **kwargs):
        return mse_loss_pallas(pred, target, weight,
                               loss_weight=self.loss_weight,
                               reduction=self.reduction)


if __name__ == "__main__":
    key = jax.random.PRNGKey(0)
    k1, k2, k3 = jax.random.split(key, 3)

    # ---- primary small NCHW case ----
    N, C, H, W = 2, 4, 16, 16
    pred = jax.random.normal(k1, (N, C, H, W), jnp.float32)
    target = jax.random.normal(k2, (N, C, H, W), jnp.float32)
    weight = jax.random.uniform(k3, (N, C, H, W), jnp.float32)

    out = jax.block_until_ready(MSELoss(loss_weight=1.0, reduction='mean')(pred, target))
    assert jnp.allclose(out, jnp.mean((pred - target) ** 2), rtol=1e-5, atol=1e-5)

    out_sum = jax.block_until_ready(MSELoss(reduction='sum')(pred, target))
    assert jnp.allclose(out_sum, jnp.sum((pred - target) ** 2), rtol=1e-4, atol=1e-3)

    out_none = jax.block_until_ready(
        MSELoss(loss_weight=0.5, reduction='none')(pred, target, weight))
    assert out_none.shape == (N, C, H, W)
    assert jnp.allclose(out_none, 0.5 * weight * (pred - target) ** 2, rtol=1e-5, atol=1e-6)

    out_w = jax.block_until_ready(MSELoss(reduction='mean')(pred, target, weight))
    ref_w = jnp.sum(weight * (pred - target) ** 2) / jnp.sum(weight)
    assert jnp.allclose(out_w, ref_w, rtol=1e-5, atol=1e-5)

    # ---- bf16 inputs (f32 accumulation in-kernel) ----
    p_bf = pred.astype(jnp.bfloat16)
    t_bf = target.astype(jnp.bfloat16)
    o_bf = jax.block_until_ready(MSELoss(reduction='mean')(p_bf, t_bf))
    ref_bf = jnp.mean((p_bf.astype(jnp.float32) - t_bf.astype(jnp.float32)) ** 2)
    assert jnp.allclose(o_bf.astype(jnp.float32), ref_bf, rtol=1e-2, atol=1e-3)

    # ---- odd size: exercises the (rare) zero-pad path ----
    kp, kt = jax.random.split(jax.random.PRNGKey(1))
    p_odd = jax.random.normal(kp, (2, 3, 5, 7), jnp.float32)
    t_odd = jax.random.normal(kt, (2, 3, 5, 7), jnp.float32)
    o_mean = jax.block_until_ready(MSELoss(reduction='mean')(p_odd, t_odd))
    assert jnp.allclose(o_mean, jnp.mean((p_odd - t_odd) ** 2), rtol=1e-5, atol=1e-5)
    o_none = jax.block_until_ready(MSELoss(reduction='none')(p_odd, t_odd))
    assert o_none.shape == p_odd.shape
    assert jnp.allclose(o_none, (p_odd - t_odd) ** 2, rtol=1e-5, atol=1e-6)

    # ---- numel % 128 == 0 but rows % 8 != 0: pad-free path with edge-block mask ----
    kp, kt, kw = jax.random.split(jax.random.PRNGKey(3), 3)
    shape9 = (3, 3, 128)                       # 1152 elems -> 9 rows -> 2 blocks of 8
    p9 = jax.random.normal(kp, shape9, jnp.float32)
    t9 = jax.random.normal(kt, shape9, jnp.float32)
    w9 = jax.random.uniform(kw, shape9, jnp.float32)
    o9 = jax.block_until_ready(MSELoss(reduction='mean')(p9, t9))
    assert jnp.allclose(o9, jnp.mean((p9 - t9) ** 2), rtol=1e-5, atol=1e-5)
    o9n = jax.block_until_ready(MSELoss(reduction='none')(p9, t9))
    assert o9n.shape == shape9
    assert jnp.allclose(o9n, (p9 - t9) ** 2, rtol=1e-5, atol=1e-6)
    o9w = jax.block_until_ready(MSELoss(reduction='mean')(p9, t9, w9))
    ref9w = jnp.sum(w9 * (p9 - t9) ** 2) / jnp.sum(w9)
    assert jnp.allclose(o9w, ref9w, rtol=1e-5, atol=1e-5)

    # ---- forced multi-block + 2-way split (clamped duplicate block + tail mask) ----
    kp, kt, kw = jax.random.split(jax.random.PRNGKey(2), 3)
    shape_b = (1, 8, 72, 128)                  # 73728 elems -> 576 rows
    p_b = jax.random.normal(kp, shape_b, jnp.float32)
    t_b = jax.random.normal(kt, shape_b, jnp.float32)
    w_b = jax.random.uniform(kw, shape_b, jnp.float32)
    small_blk = 64 << 10                       # 128 rows/block -> 5 blocks (odd)
    o_b = jax.block_until_ready(
        mse_loss_pallas(p_b, t_b, reduction='mean',
                        max_block_bytes=small_blk, num_splits=2))
    assert jnp.allclose(o_b, jnp.mean((p_b - t_b) ** 2), rtol=1e-4, atol=1e-5)
    o_bs = jax.block_until_ready(
        mse_loss_pallas(p_b, t_b, reduction='sum',
                        max_block_bytes=small_blk, num_splits=2))
    assert jnp.allclose(o_bs, jnp.sum((p_b - t_b) ** 2), rtol=1e-4, atol=1e-2)
    o_bw = jax.block_until_ready(
        mse_loss_pallas(p_b, t_b, w_b, reduction='mean',
                        max_block_bytes=small_blk, num_splits=2))
    ref_bw = jnp.sum(w_b * (p_b - t_b) ** 2) / jnp.sum(w_b)
    assert jnp.allclose(o_bw, ref_bw, rtol=1e-4, atol=1e-5)
    o_bn = jax.block_until_ready(
        mse_loss_pallas(p_b, t_b, w_b, loss_weight=0.5, reduction='none',
                        max_block_bytes=small_blk))
    assert jnp.allclose(o_bn, 0.5 * w_b * (p_b - t_b) ** 2, rtol=1e-5, atol=1e-6)

    # ---- default (auto) split selection on the same shape ----
    o_auto = jax.block_until_ready(MSELoss(reduction='mean')(p_b, t_b, w_b))
    assert jnp.allclose(o_auto, ref_bw, rtol=1e-4, atol=1e-5)

    print("KERNEL_OK")
</pallas_src>

<mosaic_0001>
module attributes {stable_mosaic.version = 11 : i64} {
  func.func @kernel(%arg0: i32, %arg1: i32, %arg2: memref<16x128xf32, #tpu.memory_space<vmem>>, %arg3: memref<16x128xf32, #tpu.memory_space<vmem>>, %arg4: memref<1x8x128xf32, #tpu.memory_space<vmem>>, %arg5: memref<8x128xf32, #tpu.memory_space<vmem>>) attributes {dimension_semantics = [#tpu.dimension_semantics<parallel>, #tpu.dimension_semantics<arbitrary>], iteration_bounds = array<i64: 1, 1>, scalar_prefetch = 0 : i64, scratch_operands = 1 : i64, tpu.core_type = #tpu.core_type<tc>, window_params = [{transform_indices = @transform_0, window_bounds = array<i64: 16, 128>}, {transform_indices = @transform_1, window_bounds = array<i64: 16, 128>}, {transform_indices = @transform_2, window_bounds = array<i64: 1, 8, 128>}]} {
    %c0_i32 = arith.constant 0 : i32
    %0 = arith.cmpi eq, %arg1, %c0_i32 : i32
    %1 = arith.extui %0 : i1 to i32
    %c0_i32_0 = arith.constant 0 : i32
    %2 = arith.cmpi ne, %1, %c0_i32_0 : i32
    scf.if %2 {
      %cst_10 = arith.constant 0.000000e+00 : f32
      %15 = vector.broadcast %cst_10 : f32 to vector<8x128xf32>
      %c0_11 = arith.constant 0 : index
      %c0_12 = arith.constant 0 : index
      %16 = vector.load %arg5[%c0_11, %c0_12] : memref<8x128xf32, #tpu.memory_space<vmem>>, vector<8x128xf32>
      tpu.vector_store %arg5[%c0_11, %c0_12], %15 {strides = array<i32>} : memref<8x128xf32, #tpu.memory_space<vmem>>, vector<8x128xf32>,
    } else {
    }
    %c0 = arith.constant 0 : index
    %c0_1 = arith.constant 0 : index
    %3 = vector.load %arg2[%c0, %c0_1] : memref<16x128xf32, #tpu.memory_space<vmem>>, vector<16x128xf32>
    %c0_2 = arith.constant 0 : index
    %c0_3 = arith.constant 0 : index
    %4 = vector.load %arg3[%c0_2, %c0_3] : memref<16x128xf32, #tpu.memory_space<vmem>>, vector<16x128xf32>
    %5 = arith.subf %3, %4 : vector<16x128xf32>
    %6 = arith.mulf %5, %5 : vector<16x128xf32>
    %c0_4 = arith.constant 0 : index
    %c0_5 = arith.constant 0 : index
    %7 = vector.load %arg5[%c0_4, %c0_5] : memref<8x128xf32, #tpu.memory_space<vmem>>, vector<8x128xf32>
    %8 = vector.shape_cast %6 : vector<16x128xf32> to vector<2x8x128xf32>
    %cst = arith.constant dense<0.000000e+00> : vector<8x128xf32>
    %9 = vector.multi_reduction <add>, %8, %cst [0] : vector<2x8x128xf32> to vector<8x128xf32>
    %10 = arith.addf %7, %9 : vector<8x128xf32>
    %c0_6 = arith.constant 0 : index
    %c0_7 = arith.constant 0 : index
    %11 = vector.load %arg5[%c0_6, %c0_7] : memref<8x128xf32, #tpu.memory_space<vmem>>, vector<8x128xf32>
    tpu.vector_store %arg5[%c0_6, %c0_7], %10 {strides = array<i32>} : memref<8x128xf32, #tpu.memory_space<vmem>>, vector<8x128xf32>,
    %c0_i32_8 = arith.constant 0 : i32
    %12 = arith.cmpi eq, %arg1, %c0_i32_8 : i32
    %13 = arith.extui %12 : i1 to i32
    %c0_i32_9 = arith.constant 0 : i32
    %14 = arith.cmpi ne, %13, %c0_i32_9 : i32
    scf.if %14 {
      %c0_10 = arith.constant 0 : index
      %c0_11 = arith.constant 0 : index
      %15 = vector.load %arg5[%c0_10, %c0_11] : memref<8x128xf32, #tpu.memory_space<vmem>>, vector<8x128xf32>
      %16 = vector.shape_cast %15 : vector<8x128xf32> to vector<1x8x128xf32>
      %c0_12 = arith.constant 0 : index
      %c0_13 = arith.constant 0 : index
      %c0_14 = arith.constant 0 : index
      %17 = vector.load %arg4[%c0_12, %c0_13, %c0_14] : memref<1x8x128xf32, #tpu.memory_space<vmem>>, vector<1x8x128xf32>
      tpu.vector_store %arg4[%c0_12, %c0_13, %c0_14], %16 {strides = array<i32>} : memref<1x8x128xf32, #tpu.memory_space<vmem>>, vector<1x8x128xf32>,
    } else {
    }
    return
  }
  func.func @transform_0(%arg0: i32, %arg1: i32) -> (i32, i32) {
    %c1_i32 = arith.constant 1 : i32
    %0 = arith.muli %arg0, %c1_i32 : i32
    %1 = arith.addi %0, %arg1 : i32
    %c0_i32 = arith.constant 0 : i32
    %c0_i32_0 = arith.constant 0 : i32
    return %1, %c0_i32 : i32, i32
  }
  func.func @transform_1(%arg0: i32, %arg1: i32) -> (i32, i32) {
    %c1_i32 = arith.constant 1 : i32
    %0 = arith.muli %arg0, %c1_i32 : i32
    %1 = arith.addi %0, %arg1 : i32
    %c0_i32 = arith.constant 0 : i32
    %c0_i32_0 = arith.constant 0 : i32
    return %1, %c0_i32 : i32, i32
  }
  func.func @transform_2(%arg0: i32, %arg1: i32) -> (i32, i32, i32) {
    %c0_i32 = arith.constant 0 : i32
    %c0_i32_0 = arith.constant 0 : i32
    %c0_i32_1 = arith.constant 0 : i32
    return %arg0, %c0_i32, %c0_i32_0 : i32, i32, i32
  }
}

</mosaic_0001>

<llo_original>
// kernel: tpu_custom_call.1
$region0: #{tpu_custom_call.1}
  #allocation0 [shape = 'u32[]', space=smem, size = 0x4, offset = 0x4, fixed_abs, tag = 'smem constant byte address 0x4 - core index']
  #allocation1 [shape = 'u32[144,128]{1,0:T(1,128)}', space=vmem, size = 0x12000, scoped, tag = 'internal scratch']
  #allocation2 [shape = 'f32[8,128]{1,0:T(8,128)}', space=vmem, size = 0x1000, scoped, tag = 'scratch operand']
  %s0 = inlined_call_operand.hbm [shape: f32[16,128], index: 0, kind: input, shape index: {}]
  %s1 = inlined_call_operand.hbm [shape: f32[16,128], index: 1, kind: input, shape index: {}]
  %s2 = inlined_call_operand.hbm [shape: f32[1,8,128], index: 2, kind: output, shape index: {}]
  %s3 = sld [smem:[#allocation0]]
  $region34: #{tpu_custom_call.1} parent=0
    _
  %s5 = ssub.s32 1, %s3
  %s6 = scalar_select 0, %s5, %s3
  $region1: #{tpu_custom_call.1} parent=0
    #allocation3 [shape = 'u8[8192]{0}', space=vmem, size = 0x2000, scoped, tag = 'input window, operand 0, single buffered']
    #allocation4 [shape = 's32[1]{0}', space=sflag, size = 0x4, scoped, tag = 'scoped memory for tpu_custom_call.1']
    #allocation5 [shape = 's32[1]{0}', space=sflag, size = 0x4, scoped, tag = 'scoped memory for tpu_custom_call.1']
    #allocation6 [shape = 'u8[8192]{0}', space=vmem, size = 0x2000, scoped, tag = 'input window, operand 1, single buffered']
    #allocation7 [shape = 's32[1]{0}', space=sflag, size = 0x4, scoped, tag = 'scoped memory for tpu_custom_call.1']
    #allocation8 [shape = 'u8[4096]{0}', space=vmem, size = 0x1000, scoped, tag = 'output window, operand 0, single buffered']
    %7 = vsyncpa [#allocation4], 0
    %8 = vsyncpa [#allocation7], 0
    %9 = vsyncpa [#allocation5], 0
    // Predicated region
    $region2: #{tpu_custom_call.1} parent=1 // pred_check
      _
    $region3: #{tpu_custom_call.1} parent=1 // pred_check_branch
      %11 = sbr.rel (0) target = $region5
    $region4: #{tpu_custom_call.1} parent=1 // pred_region
      %s12 = sadd.s32 0, 0
      %s13 = smul.u32 2, %s12
      %s15 = ssub.s32 256, 256
      %16 = vsyncadd [#allocation4], %s15
      %s17 = smul.addr %s13, 128
      %s18 = scalar_lea.hbm %s0, %s17
      %s19 = sshll.u32 [#allocation3], 4
      %s20 = int_to_ptr.vmem [resolvable:$true] %s19
      %25 = dma.hbm_to_vmem [thread:$0]  %s18, 256, %s20, [#allocation4], 128, 128, 8
    $region5: #{tpu_custom_call.1} parent=1 // pred_fallthru
      _
    // Predicated region
    $region6: #{tpu_custom_call.1} parent=1 // pred_check
      _
    $region7: #{tpu_custom_call.1} parent=1 // pred_check_branch
      %27 = sbr.rel (0) target = $region9
    $region8: #{tpu_custom_call.1} parent=1 // pred_region
      %s28 = sadd.s32 0, 0
      %s29 = smul.u32 2, %s28
      %s31 = ssub.s32 256, 256
      %32 = vsyncadd [#allocation7], %s31
      %s33 = smul.addr %s29, 128
      %s34 = scalar_lea.hbm %s1, %s33
      %s35 = sshll.u32 [#allocation6], 4
      %s36 = int_to_ptr.vmem [resolvable:$true] %s35
      %41 = dma.hbm_to_vmem [thread:$0]  %s34, 256, %s36, [#allocation7], 128, 128, 8
    $region9: #{tpu_custom_call.1} parent=1 // pred_fallthru
      _
    // Predicated region
    $region10: #{tpu_custom_call.1} parent=1 // pred_check
      _
    $region11: #{tpu_custom_call.1} parent=1 // pred_check_branch
      %43 = sbr.rel (0) target = $region13
    $region12: #{tpu_custom_call.1} parent=1 // pred_region
      %44 = dma.done [#allocation4], 256
    $region13: #{tpu_custom_call.1} parent=1 // pred_fallthru
      _
    // Predicated region
    $region14: #{tpu_custom_call.1} parent=1 // pred_check
      _
    $region15: #{tpu_custom_call.1} parent=1 // pred_check_branch
      %46 = sbr.rel (0) target = $region17
    $region16: #{tpu_custom_call.1} parent=1 // pred_region
      %47 = dma.done [#allocation7], 256
    $region17: #{tpu_custom_call.1} parent=1 // pred_fallthru
      _
    %s48 = sadd.s32 0, 0
    %s49 = smul.u32 2, %s48
    %s50 = sadd.s32 0, 0
    %s51 = smul.u32 2, %s50
    %p52 = scmp.eq.s32.totalorder 0, 0
    // Predicated region
    $region18: #{tpu_custom_call.1} parent=1 // pred_check
      %p53 = pneg %p52
    $region19: #{tpu_custom_call.1} parent=1 // pred_check_branch
      %55 = sbr.rel (%p53) target = $region21
    $region20: #{tpu_custom_call.1} parent=1 // pred_region
      %56 = vst [vmem:[#allocation2] sm:$0xff] 0.0
    $region21: #{tpu_custom_call.1} parent=1 // pred_fallthru
      _
    %v57 = vld [vmem:[#allocation3] sm:$0xff]
    %v58 = vld [vmem:[#allocation3 + $0x8] sm:$0xff]
    %v59 = vld [vmem:[#allocation6] sm:$0xff]
    %v60 = vld [vmem:[#allocation6 + $0x8] sm:$0xff]
    %v61 = vsub.f32 %v57, %v59
    %v62 = vsub.f32 %v58, %v60
    %v63 = vmul.f32 %v61, %v61
    %v64 = vmul.f32 %v62, %v62
    %v65 = vld [vmem:[#allocation2] sm:$0xff]
    %v66 = vadd.f32 %v63, %v64
    %v67 = vadd.f32 %v65, %v66
    %68 = vst [vmem:[#allocation2] sm:$0xff] %v67
    // Predicated region
    $region22: #{tpu_custom_call.1} parent=1 // pred_check
      %p69 = pneg %p52
    $region23: #{tpu_custom_call.1} parent=1 // pred_check_branch
      %71 = sbr.rel (%p69) target = $region25
    $region24: #{tpu_custom_call.1} parent=1 // pred_region
      %v72 = vld [vmem:[#allocation2] sm:$0xff]
      %73 = vst [vmem:[#allocation8] sm:$0xff] %v72
    $region25: #{tpu_custom_call.1} parent=1 // pred_fallthru
      _
    // Predicated region
    $region26: #{tpu_custom_call.1} parent=1 // pred_check
      _
    $region27: #{tpu_custom_call.1} parent=1 // pred_check_branch
      %75 = sbr.rel (0) target = $region29
    $region28: #{tpu_custom_call.1} parent=1 // pred_region
      %s77 = ssub.s32 128, 128
      %78 = vsyncadd [#allocation5], %s77
      %s80 = sshll.u32 [#allocation8], 4
      %s81 = int_to_ptr.vmem [resolvable:$true] %s80
      %83 = dma.vmem_to_hbm [thread:$0]  %s81, 128, %s2, [#allocation5]
    $region29: #{tpu_custom_call.1} parent=1 // pred_fallthru
      _
    // Predicated region
    $region30: #{tpu_custom_call.1} parent=1 // pred_check
      _
    $region31: #{tpu_custom_call.1} parent=1 // pred_check_branch
      %85 = sbr.rel (0) target = $region33
    $region32: #{tpu_custom_call.1} parent=1 // pred_region
      %86 = dma.done [#allocation5], 128
    $region33: #{tpu_custom_call.1} parent=1 // pred_fallthru
      _
    %87 = vsyncpa [#allocation4], 1
    %88 = vsyncpa [#allocation7], 1
    %89 = vsyncpa [#allocation5], 1

</llo_original>
